<compile_context>
chip_gen: v7x
topology: tpu7x:2x2x1
jax: 0.10.0
libtpu: 0.0.40
codegen_flags: <defaults>
</compile_context>

<pallas_src>
import functools

import jax
import jax.numpy as jnp
from jax.experimental import pallas as pl
from jax.experimental.pallas import tpu as pltpu

hidden_size = 5
input_size = 2
output_size = 1


def _round_up(n, m):
    return ((n + m - 1) // m) * m


def _simple_nn_kernel(xt_ref, w1_ref, b1_ref, w2_ref, b2_ref, o_ref):
    # xt_ref: (input_size, TB) VMEM  -- batch on the lane axis
    # w1_ref: (input_size, hidden)   SMEM (scalars)
    # b1_ref: (hidden,)              SMEM
    # w2_ref: (hidden,)              SMEM
    # b2_ref: (1,)                   SMEM
    # o_ref : (1, TB)                VMEM -- lane-dense output block
    x_rows = [xt_ref[k:k + 1, :] for k in range(input_size)]  # each (1, TB) f32

    acc = jnp.zeros(o_ref.shape, jnp.float32)
    for j in range(hidden_size):
        # h_j[b] = b1[j] + sum_k w1[k, j] * x[b, k]   (pure VPU broadcast-MAC)
        h_j = b1_ref[j] + w1_ref[0, j] * x_rows[0]
        for k in range(1, input_size):
            h_j = h_j + w1_ref[k, j] * x_rows[k]
        h_j = jnp.maximum(h_j, 0.0)                   # ReLU
        acc = acc + w2_ref[j] * h_j                   # fc2 accumulation

    y = acc + b2_ref[0]
    o_ref[...] = 1.0 / (1.0 + jnp.exp(-y))            # Sigmoid (EUP exp + recip)


def simple_nn_forward(x, w1, b1, w2, b2, *, tile_b=2048):
    """x: (B, input_size) f32 -> (B, output_size) f32."""
    batch = x.shape[0]

    # Lane-dense batch tiling: TB is a multiple of 128, batch padded to TB grid.
    tb = min(_round_up(tile_b, 128), _round_up(batch, 128))
    b_pad = pl.cdiv(batch, tb) * tb
    num_tiles = b_pad // tb

    # Transpose + zero-pad: batch goes onto the lane axis (layout plumbing in XLA).
    xt = jnp.zeros((input_size, b_pad), jnp.float32).at[:, :batch].set(
        x.astype(jnp.float32).T)

    kernel = pl.pallas_call(
        _simple_nn_kernel,
        out_shape=jax.ShapeDtypeStruct((1, b_pad), jnp.float32),
        grid=(num_tiles,),
        in_specs=[
            # Activations: one (input_size, TB) VMEM block per grid step.
            pl.BlockSpec((input_size, tb), lambda i: (0, i)),
            # Tiny weights / biases: whole arrays in SMEM, read as scalars.
            pl.BlockSpec(memory_space=pltpu.MemorySpace.SMEM),
            pl.BlockSpec(memory_space=pltpu.MemorySpace.SMEM),
            pl.BlockSpec(memory_space=pltpu.MemorySpace.SMEM),
            pl.BlockSpec(memory_space=pltpu.MemorySpace.SMEM),
        ],
        # Lane-dense output: last dim is TB (multiple of 128), not output_size=1.
        out_specs=pl.BlockSpec((1, tb), lambda i: (0, i)),
        compiler_params=pltpu.CompilerParams(
            dimension_semantics=("parallel",)),
    )

    out_flat = kernel(
        xt,
        w1.astype(jnp.float32),                 # (input_size, hidden)
        b1.reshape(-1).astype(jnp.float32),     # (hidden,)
        w2.reshape(-1).astype(jnp.float32),     # (hidden,)  (output_size == 1)
        b2.reshape(-1).astype(jnp.float32),     # (1,)
    )
    # Back to the PyTorch layout.
    return out_flat[0, :batch].reshape(batch, output_size)


def init_params(key):
    # Deterministic init mimicking nn.Linear's U(-1/sqrt(fan_in), 1/sqrt(fan_in)).
    k1, k2, k3, k4 = jax.random.split(key, 4)
    bound1 = 1.0 / (input_size ** 0.5)
    bound2 = 1.0 / (hidden_size ** 0.5)
    w1 = jax.random.uniform(k1, (input_size, hidden_size), jnp.float32,
                            minval=-bound1, maxval=bound1)
    b1 = jax.random.uniform(k2, (hidden_size,), jnp.float32,
                            minval=-bound1, maxval=bound1)
    w2 = jax.random.uniform(k3, (hidden_size, output_size), jnp.float32,
                            minval=-bound2, maxval=bound2)
    b2 = jax.random.uniform(k4, (output_size,), jnp.float32,
                            minval=-bound2, maxval=bound2)
    return w1, b1, w2, b2


def _reference(x, w1, b1, w2, b2):
    h = jnp.maximum(x @ w1 + b1, 0.0)
    return 1.0 / (1.0 + jnp.exp(-(h @ w2 + b2)))


if __name__ == "__main__":
    key = jax.random.PRNGKey(0)
    k_in, k_in2, k_param = jax.random.split(key, 3)
    w1, b1, w2, b2 = init_params(k_param)

    # Small case (single tile).
    batch = 8
    x = jax.random.normal(k_in, (batch, input_size), jnp.float32)
    out = jax.block_until_ready(simple_nn_forward(x, w1, b1, w2, b2))
    ref = _reference(x, w1, b1, w2, b2)
    assert out.shape == (batch, output_size)
    assert jnp.allclose(out, ref, atol=1e-5, rtol=1e-5)

    # Multi-tile case (exercises the batch grid + padding path).
    batch2 = 300
    x2 = jax.random.normal(k_in2, (batch2, input_size), jnp.float32)
    out2 = jax.block_until_ready(
        simple_nn_forward(x2, w1, b1, w2, b2, tile_b=128))
    ref2 = _reference(x2, w1, b1, w2, b2)
    assert out2.shape == (batch2, output_size)
    assert jnp.allclose(out2, ref2, atol=1e-5, rtol=1e-5)

    print("KERNEL_OK")
</pallas_src>

<mosaic_0001>
module attributes {stable_mosaic.version = 11 : i64} {
  func.func @_simple_nn_kernel(%arg0: i32, %arg1: memref<2x128xf32, #tpu.memory_space<vmem>>, %arg2: memref<2x5xf32, #tpu.memory_space<smem>>, %arg3: memref<5xf32, #tpu.memory_space<smem>>, %arg4: memref<5xf32, #tpu.memory_space<smem>>, %arg5: memref<1xf32, #tpu.memory_space<smem>>, %arg6: memref<1x128xf32, #tpu.memory_space<vmem>>) attributes {dimension_semantics = [#tpu.dimension_semantics<parallel>], iteration_bounds = array<i64: 1>, scalar_prefetch = 0 : i64, scratch_operands = 0 : i64, tpu.core_type = #tpu.core_type<tc>, window_params = [{transform_indices = @transform_0, window_bounds = array<i64: 2, 128>}, {transform_indices = @transform_1, window_bounds = array<i64: 2, 5>}, {transform_indices = @transform_2, window_bounds = array<i64: 5>}, {transform_indices = @transform_3, window_bounds = array<i64: 5>}, {transform_indices = @transform_4, window_bounds = array<i64: 1>}, {transform_indices = @transform_5, window_bounds = array<i64: 1, 128>}]} {
    %c0 = arith.constant 0 : index
    %c0_0 = arith.constant 0 : index
    %0 = vector.load %arg1[%c0, %c0_0] : memref<2x128xf32, #tpu.memory_space<vmem>>, vector<1x128xf32>
    %c1 = arith.constant 1 : index
    %c0_1 = arith.constant 0 : index
    %1 = vector.load %arg1[%c1, %c0_1] : memref<2x128xf32, #tpu.memory_space<vmem>>, vector<1x128xf32>
    %cst = arith.constant 0.000000e+00 : f32
    %2 = vector.broadcast %cst : f32 to vector<1x128xf32>
    %c0_2 = arith.constant 0 : index
    %3 = memref.load %arg3[%c0_2] : memref<5xf32, #tpu.memory_space<smem>>
    %c0_3 = arith.constant 0 : index
    %c0_4 = arith.constant 0 : index
    %4 = memref.load %arg2[%c0_3, %c0_4] : memref<2x5xf32, #tpu.memory_space<smem>>
    %5 = vector.broadcast %4 : f32 to vector<1x128xf32>
    %6 = arith.mulf %5, %0 : vector<1x128xf32>
    %7 = vector.broadcast %3 : f32 to vector<1x128xf32>
    %8 = arith.addf %7, %6 : vector<1x128xf32>
    %c1_5 = arith.constant 1 : index
    %c0_6 = arith.constant 0 : index
    %9 = memref.load %arg2[%c1_5, %c0_6] : memref<2x5xf32, #tpu.memory_space<smem>>
    %10 = vector.broadcast %9 : f32 to vector<1x128xf32>
    %11 = arith.mulf %10, %1 : vector<1x128xf32>
    %12 = arith.addf %8, %11 : vector<1x128xf32>
    %cst_7 = arith.constant 0.000000e+00 : f32
    %13 = vector.broadcast %cst_7 : f32 to vector<1x128xf32>
    %14 = arith.maximumf %12, %13 : vector<1x128xf32>
    %c0_8 = arith.constant 0 : index
    %15 = memref.load %arg4[%c0_8] : memref<5xf32, #tpu.memory_space<smem>>
    %16 = vector.broadcast %15 : f32 to vector<1x128xf32>
    %17 = arith.mulf %16, %14 : vector<1x128xf32>
    %18 = arith.addf %2, %17 : vector<1x128xf32>
    %c1_9 = arith.constant 1 : index
    %19 = memref.load %arg3[%c1_9] : memref<5xf32, #tpu.memory_space<smem>>
    %c0_10 = arith.constant 0 : index
    %c1_11 = arith.constant 1 : index
    %20 = memref.load %arg2[%c0_10, %c1_11] : memref<2x5xf32, #tpu.memory_space<smem>>
    %21 = vector.broadcast %20 : f32 to vector<1x128xf32>
    %22 = arith.mulf %21, %0 : vector<1x128xf32>
    %23 = vector.broadcast %19 : f32 to vector<1x128xf32>
    %24 = arith.addf %23, %22 : vector<1x128xf32>
    %c1_12 = arith.constant 1 : index
    %c1_13 = arith.constant 1 : index
    %25 = memref.load %arg2[%c1_12, %c1_13] : memref<2x5xf32, #tpu.memory_space<smem>>
    %26 = vector.broadcast %25 : f32 to vector<1x128xf32>
    %27 = arith.mulf %26, %1 : vector<1x128xf32>
    %28 = arith.addf %24, %27 : vector<1x128xf32>
    %cst_14 = arith.constant 0.000000e+00 : f32
    %29 = vector.broadcast %cst_14 : f32 to vector<1x128xf32>
    %30 = arith.maximumf %28, %29 : vector<1x128xf32>
    %c1_15 = arith.constant 1 : index
    %31 = memref.load %arg4[%c1_15] : memref<5xf32, #tpu.memory_space<smem>>
    %32 = vector.broadcast %31 : f32 to vector<1x128xf32>
    %33 = arith.mulf %32, %30 : vector<1x128xf32>
    %34 = arith.addf %18, %33 : vector<1x128xf32>
    %c2 = arith.constant 2 : index
    %35 = memref.load %arg3[%c2] : memref<5xf32, #tpu.memory_space<smem>>
    %c0_16 = arith.constant 0 : index
    %c2_17 = arith.constant 2 : index
    %36 = memref.load %arg2[%c0_16, %c2_17] : memref<2x5xf32, #tpu.memory_space<smem>>
    %37 = vector.broadcast %36 : f32 to vector<1x128xf32>
    %38 = arith.mulf %37, %0 : vector<1x128xf32>
    %39 = vector.broadcast %35 : f32 to vector<1x128xf32>
    %40 = arith.addf %39, %38 : vector<1x128xf32>
    %c1_18 = arith.constant 1 : index
    %c2_19 = arith.constant 2 : index
    %41 = memref.load %arg2[%c1_18, %c2_19] : memref<2x5xf32, #tpu.memory_space<smem>>
    %42 = vector.broadcast %41 : f32 to vector<1x128xf32>
    %43 = arith.mulf %42, %1 : vector<1x128xf32>
    %44 = arith.addf %40, %43 : vector<1x128xf32>
    %cst_20 = arith.constant 0.000000e+00 : f32
    %45 = vector.broadcast %cst_20 : f32 to vector<1x128xf32>
    %46 = arith.maximumf %44, %45 : vector<1x128xf32>
    %c2_21 = arith.constant 2 : index
    %47 = memref.load %arg4[%c2_21] : memref<5xf32, #tpu.memory_space<smem>>
    %48 = vector.broadcast %47 : f32 to vector<1x128xf32>
    %49 = arith.mulf %48, %46 : vector<1x128xf32>
    %50 = arith.addf %34, %49 : vector<1x128xf32>
    %c3 = arith.constant 3 : index
    %51 = memref.load %arg3[%c3] : memref<5xf32, #tpu.memory_space<smem>>
    %c0_22 = arith.constant 0 : index
    %c3_23 = arith.constant 3 : index
    %52 = memref.load %arg2[%c0_22, %c3_23] : memref<2x5xf32, #tpu.memory_space<smem>>
    %53 = vector.broadcast %52 : f32 to vector<1x128xf32>
    %54 = arith.mulf %53, %0 : vector<1x128xf32>
    %55 = vector.broadcast %51 : f32 to vector<1x128xf32>
    %56 = arith.addf %55, %54 : vector<1x128xf32>
    %c1_24 = arith.constant 1 : index
    %c3_25 = arith.constant 3 : index
    %57 = memref.load %arg2[%c1_24, %c3_25] : memref<2x5xf32, #tpu.memory_space<smem>>
    %58 = vector.broadcast %57 : f32 to vector<1x128xf32>
    %59 = arith.mulf %58, %1 : vector<1x128xf32>
    %60 = arith.addf %56, %59 : vector<1x128xf32>
    %cst_26 = arith.constant 0.000000e+00 : f32
    %61 = vector.broadcast %cst_26 : f32 to vector<1x128xf32>
    %62 = arith.maximumf %60, %61 : vector<1x128xf32>
    %c3_27 = arith.constant 3 : index
    %63 = memref.load %arg4[%c3_27] : memref<5xf32, #tpu.memory_space<smem>>
    %64 = vector.broadcast %63 : f32 to vector<1x128xf32>
    %65 = arith.mulf %64, %62 : vector<1x128xf32>
    %66 = arith.addf %50, %65 : vector<1x128xf32>
    %c4 = arith.constant 4 : index
    %67 = memref.load %arg3[%c4] : memref<5xf32, #tpu.memory_space<smem>>
    %c0_28 = arith.constant 0 : index
    %c4_29 = arith.constant 4 : index
    %68 = memref.load %arg2[%c0_28, %c4_29] : memref<2x5xf32, #tpu.memory_space<smem>>
    %69 = vector.broadcast %68 : f32 to vector<1x128xf32>
    %70 = arith.mulf %69, %0 : vector<1x128xf32>
    %71 = vector.broadcast %67 : f32 to vector<1x128xf32>
    %72 = arith.addf %71, %70 : vector<1x128xf32>
    %c1_30 = arith.constant 1 : index
    %c4_31 = arith.constant 4 : index
    %73 = memref.load %arg2[%c1_30, %c4_31] : memref<2x5xf32, #tpu.memory_space<smem>>
    %74 = vector.broadcast %73 : f32 to vector<1x128xf32>
    %75 = arith.mulf %74, %1 : vector<1x128xf32>
    %76 = arith.addf %72, %75 : vector<1x128xf32>
    %cst_32 = arith.constant 0.000000e+00 : f32
    %77 = vector.broadcast %cst_32 : f32 to vector<1x128xf32>
    %78 = arith.maximumf %76, %77 : vector<1x128xf32>
    %c4_33 = arith.constant 4 : index
    %79 = memref.load %arg4[%c4_33] : memref<5xf32, #tpu.memory_space<smem>>
    %80 = vector.broadcast %79 : f32 to vector<1x128xf32>
    %81 = arith.mulf %80, %78 : vector<1x128xf32>
    %82 = arith.addf %66, %81 : vector<1x128xf32>
    %c0_34 = arith.constant 0 : index
    %83 = memref.load %arg5[%c0_34] : memref<1xf32, #tpu.memory_space<smem>>
    %84 = vector.broadcast %83 : f32 to vector<1x128xf32>
    %85 = arith.addf %82, %84 : vector<1x128xf32>
    %cst_35 = arith.constant 0.000000e+00 : f32
    %86 = vector.broadcast %cst_35 : f32 to vector<1x128xf32>
    %87 = arith.subf %86, %85 : vector<1x128xf32>
    %88 = math.exp %87 : vector<1x128xf32>
    %cst_36 = arith.constant 1.000000e+00 : f32
    %89 = vector.broadcast %cst_36 : f32 to vector<1x128xf32>
    %90 = arith.addf %89, %88 : vector<1x128xf32>
    %cst_37 = arith.constant 1.000000e+00 : f32
    %91 = vector.broadcast %cst_37 : f32 to vector<1x128xf32>
    %92 = arith.divf %91, %90 : vector<1x128xf32>
    %c0_38 = arith.constant 0 : index
    %c0_39 = arith.constant 0 : index
    %93 = vector.load %arg6[%c0_38, %c0_39] : memref<1x128xf32, #tpu.memory_space<vmem>>, vector<1x128xf32>
    tpu.vector_store %arg6[%c0_38, %c0_39], %92 {strides = array<i32>} : memref<1x128xf32, #tpu.memory_space<vmem>>, vector<1x128xf32>,
    return
  }
  func.func @transform_0(%arg0: i32) -> (i32, i32) {
    %c0_i32 = arith.constant 0 : i32
    %c0_i32_0 = arith.constant 0 : i32
    return %c0_i32, %arg0 : i32, i32
  }
  func.func @transform_1(%arg0: i32) -> (i32, i32) {
    %c0_i32 = arith.constant 0 : i32
    %c0_i32_0 = arith.constant 0 : i32
    %c0_i32_1 = arith.constant 0 : i32
    return %c0_i32, %c0_i32_0 : i32, i32
  }
  func.func @transform_2(%arg0: i32) -> i32 {
    %c0_i32 = arith.constant 0 : i32
    %c0_i32_0 = arith.constant 0 : i32
    return %c0_i32 : i32
  }
  func.func @transform_3(%arg0: i32) -> i32 {
    %c0_i32 = arith.constant 0 : i32
    %c0_i32_0 = arith.constant 0 : i32
    return %c0_i32 : i32
  }
  func.func @transform_4(%arg0: i32) -> i32 {
    %c0_i32 = arith.constant 0 : i32
    %c0_i32_0 = arith.constant 0 : i32
    return %c0_i32 : i32
  }
  func.func @transform_5(%arg0: i32) -> (i32, i32) {
    %c0_i32 = arith.constant 0 : i32
    %c0_i32_0 = arith.constant 0 : i32
    return %c0_i32, %arg0 : i32, i32
  }
}

</mosaic_0001>

<llo_original>
// kernel: tpu_custom_call.1
$region0: #{tpu_custom_call.1}
  #allocation0 [shape = 'u32[]', space=smem, size = 0x4, offset = 0x4, fixed_abs, tag = 'smem constant byte address 0x4 - core index']
  #allocation1 [shape = 'u32[144,128]{1,0:T(1,128)}', space=vmem, size = 0x12000, scoped, tag = 'internal scratch']
  #allocation2 [shape = 'f32[1]{0:T(128)S(6)}', space=smem, size = 0x200, scoped, tag = 'scoped memory for tpu_custom_call.1']
  %s0 = inlined_call_operand.vmem [shape: f32[2,128], index: 0, kind: input, shape index: {}]
  %s1 = inlined_call_operand.vmem [shape: f32[2,5], index: 1, kind: input, shape index: {}]
  %s2 = inlined_call_operand.vmem [shape: f32[5], index: 2, kind: input, shape index: {}]
  %s3 = inlined_call_operand.vmem [shape: f32[5], index: 3, kind: input, shape index: {}]
  %s4 = inlined_call_operand.<no memory space> [shape: f32[1], index: 4, kind: input, shape index: {}]
  %s5 = inlined_call_operand.hbm [shape: f32[1,128], index: 5, kind: output, shape index: {}]
  %s6 = sld [smem:[#allocation0]]
  $region42: #{tpu_custom_call.1} parent=0
    _
  %s8 = ssub.s32 1, %s6
  %s9 = scalar_select 0, %s8, %s6
  %10 = sst [smem:[#allocation2]] %s4
  $region1: #{tpu_custom_call.1} parent=0
    #allocation3 [shape = 'u8[1024]{0}', space=smem, size = 0x400, scoped, tag = 'input window, operand 1, single buffered']
    #allocation4 [shape = 's32[1]{0}', space=sflag, size = 0x4, scoped, tag = 'scoped memory for tpu_custom_call.1']
    #allocation5 [shape = 's32[1]{0}', space=sflag, size = 0x4, scoped, tag = 'scoped memory for tpu_custom_call.1']
    #allocation6 [shape = 'u8[512]{0}', space=smem, size = 0x200, scoped, tag = 'input window, operand 2, single buffered']
    #allocation7 [shape = 's32[1]{0}', space=sflag, size = 0x4, scoped, tag = 'scoped memory for tpu_custom_call.1']
    #allocation8 [shape = 'u8[512]{0}', space=smem, size = 0x200, scoped, tag = 'input window, operand 3, single buffered']
    #allocation9 [shape = 'u8[512]{0}', space=vmem, size = 0x400, scoped, tag = 'output window, operand 0, single buffered']
    %11 = vsyncpa [#allocation5], 0
    %12 = vsyncpa [#allocation7], 0
    %13 = vsyncpa [#allocation4], 0
    // Predicated region
    $region2: #{tpu_custom_call.1} parent=1 // pred_check
      _
    $region3: #{tpu_custom_call.1} parent=1 // pred_check_branch
      %15 = sbr.rel (0) target = $region5
    $region4: #{tpu_custom_call.1} parent=1 // pred_region
      _
    $region5: #{tpu_custom_call.1} parent=1 // pred_fallthru
      _
    // Predicated region
    $region6: #{tpu_custom_call.1} parent=1 // pred_check
      _
    $region7: #{tpu_custom_call.1} parent=1 // pred_check_branch
      %17 = sbr.rel (0) target = $region9
    $region8: #{tpu_custom_call.1} parent=1 // pred_region
      %s19 = ssub.s32 32, 32
      %20 = vsyncadd [#allocation5], %s19
      %s22 = sshll.u32 %s1, 4
      %s23 = int_to_ptr.vmem [resolvable:$true] %s22
      %25 = dma.vmem_to_smem %s23, 32, [#allocation3], [#allocation5]
    $region9: #{tpu_custom_call.1} parent=1 // pred_fallthru
      _
    // Predicated region
    $region10: #{tpu_custom_call.1} parent=1 // pred_check
      _
    $region11: #{tpu_custom_call.1} parent=1 // pred_check_branch
      %27 = sbr.rel (0) target = $region13
    $region12: #{tpu_custom_call.1} parent=1 // pred_region
      %s29 = ssub.s32 16, 16
      %30 = vsyncadd [#allocation7], %s29
      %s32 = sshll.u32 %s2, 4
      %s33 = int_to_ptr.vmem [resolvable:$true] %s32
      %35 = dma.vmem_to_smem %s33, 16, [#allocation6], [#allocation7]
    $region13: #{tpu_custom_call.1} parent=1 // pred_fallthru
      _
    // Predicated region
    $region14: #{tpu_custom_call.1} parent=1 // pred_check
      _
    $region15: #{tpu_custom_call.1} parent=1 // pred_check_branch
      %37 = sbr.rel (0) target = $region17
    $region16: #{tpu_custom_call.1} parent=1 // pred_region
      %s39 = ssub.s32 16, 16
      %40 = vsyncadd [#allocation7], %s39
      %s42 = sshll.u32 %s3, 4
      %s43 = int_to_ptr.vmem [resolvable:$true] %s42
      %45 = dma.vmem_to_smem %s43, 16, [#allocation8], [#allocation7]
    $region17: #{tpu_custom_call.1} parent=1 // pred_fallthru
      _
    // Predicated region
    $region18: #{tpu_custom_call.1} parent=1 // pred_check
      _
    $region19: #{tpu_custom_call.1} parent=1 // pred_check_branch
      %47 = sbr.rel (0) target = $region21
    $region20: #{tpu_custom_call.1} parent=1 // pred_region
      _
    $region21: #{tpu_custom_call.1} parent=1 // pred_fallthru
      _
    // Predicated region
    $region22: #{tpu_custom_call.1} parent=1 // pred_check
      _
    $region23: #{tpu_custom_call.1} parent=1 // pred_check_branch
      %49 = sbr.rel (0) target = $region25
    $region24: #{tpu_custom_call.1} parent=1 // pred_region
      %50 = dma.done [#allocation5], 32
    $region25: #{tpu_custom_call.1} parent=1 // pred_fallthru
      _
    // Predicated region
    $region26: #{tpu_custom_call.1} parent=1 // pred_check
      _
    $region27: #{tpu_custom_call.1} parent=1 // pred_check_branch
      %52 = sbr.rel (0) target = $region29
    $region28: #{tpu_custom_call.1} parent=1 // pred_region
      %53 = dma.done [#allocation7], 16
    $region29: #{tpu_custom_call.1} parent=1 // pred_fallthru
      _
    // Predicated region
    $region30: #{tpu_custom_call.1} parent=1 // pred_check
      _
    $region31: #{tpu_custom_call.1} parent=1 // pred_check_branch
      %55 = sbr.rel (0) target = $region33
    $region32: #{tpu_custom_call.1} parent=1 // pred_region
      %56 = dma.done [#allocation7], 16
    $region33: #{tpu_custom_call.1} parent=1 // pred_fallthru
      _
    %57 = sfence
    %v58 = vld [vmem:[%s0] sm:$0x1]
    %v59 = vld [vmem:[%s0 + $0x1] sm:$0x1]
    %s60 = sld [smem:[#allocation6]]
    %s61 = sld [smem:[#allocation3]]
    %v62 = vstv %s61
    %v63 = vmul.f32 %v62, %v58
    %v64 = vstv %s60
    %v65 = vadd.f32 %v64, %v63
    %s66 = sld [smem:[#allocation3 + $0x80]]
    %v67 = vstv %s66
    %v68 = vmul.f32 %v67, %v59
    %v69 = vadd.f32 %v65, %v68
    %v70 = vmax.f32 %v69, 0.0
    %s71 = sld [smem:[#allocation8]]
    %v72 = vstv %s71
    %v73 = vmul.f32 %v72, %v70
    %v74 = vadd.f32 %v73, 0.0
    %s75 = sld [smem:[#allocation6 + $0x1]]
    %s76 = sld [smem:[#allocation3 + $0x1]]
    %v77 = vstv %s76
    %v78 = vmul.f32 %v77, %v58
    %v79 = vstv %s75
    %v80 = vadd.f32 %v79, %v78
    %s81 = sld [smem:[#allocation3 + $0x81]]
    %v82 = vstv %s81
    %v83 = vmul.f32 %v82, %v59
    %v84 = vadd.f32 %v80, %v83
    %v85 = vmax.f32 %v84, 0.0
    %s86 = sld [smem:[#allocation8 + $0x1]]
    %v87 = vstv %s86
    %v88 = vmul.f32 %v87, %v85
    %v89 = vadd.f32 %v74, %v88
    %s90 = sld [smem:[#allocation6 + $0x2]]
    %s91 = sld [smem:[#allocation3 + $0x2]]
    %v92 = vstv %s91
    %v93 = vmul.f32 %v92, %v58
    %v94 = vstv %s90
    %v95 = vadd.f32 %v94, %v93
    %s96 = sld [smem:[#allocation3 + $0x82]]
    %v97 = vstv %s96
    %v98 = vmul.f32 %v97, %v59
    %v99 = vadd.f32 %v95, %v98
    %v100 = vmax.f32 %v99, 0.0
    %s101 = sld [smem:[#allocation8 + $0x2]]
    %v102 = vstv %s101
    %v103 = vmul.f32 %v102, %v100
    %v104 = vadd.f32 %v89, %v103
    %s105 = sld [smem:[#allocation6 + $0x3]]
    %s106 = sld [smem:[#allocation3 + $0x3]]
    %v107 = vstv %s106
    %v108 = vmul.f32 %v107, %v58
    %v109 = vstv %s105
    %v110 = vadd.f32 %v109, %v108
    %s111 = sld [smem:[#allocation3 + $0x83]]
    %v112 = vstv %s111
    %v113 = vmul.f32 %v112, %v59
    %v114 = vadd.f32 %v110, %v113
    %v115 = vmax.f32 %v114, 0.0
    %s116 = sld [smem:[#allocation8 + $0x3]]
    %v117 = vstv %s116
    %v118 = vmul.f32 %v117, %v115
    %v119 = vadd.f32 %v104, %v118
    %s120 = sld [smem:[#allocation6 + $0x4]]
    %s121 = sld [smem:[#allocation3 + $0x4]]
    %v122 = vstv %s121
    %v123 = vmul.f32 %v122, %v58
    %v124 = vstv %s120
    %v125 = vadd.f32 %v124, %v123
    %s126 = sld [smem:[#allocation3 + $0x84]]
    %v127 = vstv %s126
    %v128 = vmul.f32 %v127, %v59
    %v129 = vadd.f32 %v125, %v128
    %v130 = vmax.f32 %v129, 0.0
    %s131 = sld [smem:[#allocation8 + $0x4]]
    %v132 = vstv %s131
    %v133 = vmul.f32 %v132, %v130
    %v134 = vadd.f32 %v119, %v133
    %s135 = sld [smem:[#allocation2]]
    %v136 = vstv %s135
    %v137 = vadd.f32 %v134, %v136
    %v138 = vsub.f32 0.0, %v137
    %v139 = vmul.f32 %v138, 1.442695
    %v140 = vpow.pop %v139
    %v141 = vadd.f32 %v140, 1.0
    %v142 = vrcp.pop %v141
    %v143 = vmul.f32 1.0, %v142
    %144 = vst [vmem:[#allocation9] sm:$0x1] %v143
    // Predicated region
    $region34: #{tpu_custom_call.1} parent=1 // pred_check
      _
    $region35: #{tpu_custom_call.1} parent=1 // pred_check_branch
      %146 = sbr.rel (0) target = $region37
    $region36: #{tpu_custom_call.1} parent=1 // pred_region
      %s148 = ssub.s32 16, 16
      %149 = vsyncadd [#allocation4], %s148
      %s151 = sshll.u32 [#allocation9], 4
      %s152 = int_to_ptr.vmem [resolvable:$true] %s151
      %154 = dma.vmem_to_hbm [thread:$0]  %s152, 16, %s5, [#allocation4]
    $region37: #{tpu_custom_call.1} parent=1 // pred_fallthru
      _
    // Predicated region
    $region38: #{tpu_custom_call.1} parent=1 // pred_check
      _
    $region39: #{tpu_custom_call.1} parent=1 // pred_check_branch
      %156 = sbr.rel (0) target = $region41
    $region40: #{tpu_custom_call.1} parent=1 // pred_region
      %157 = dma.done [#allocation4], 16
    $region41: #{tpu_custom_call.1} parent=1 // pred_fallthru
      _
    %158 = vsyncpa [#allocation4], 1
    %159 = vsyncpa [#allocation5], 1
    %160 = vsyncpa [#allocation7], 1

</llo_original>
